<compile_context>
chip_gen: v6e
topology: v6e:2x2x1
jax: 0.10.0
libtpu: 0.0.40
codegen_flags: <defaults>
</compile_context>

<pallas_src>
import math

import jax
import jax.numpy as jnp
from jax.experimental import pallas as pl
from jax.experimental.pallas import tpu as pltpu


# ----------------------------------------------------------------------------
# small helpers
# ----------------------------------------------------------------------------
def _round_up(x, m):
    return ((x + m - 1) // m) * m


def _pad_to(x, shape):
    """Zero-pad a 2-D array up to `shape` (pad on the high side only)."""
    pads = [(0, t - s) for s, t in zip(x.shape, shape)]
    if all(p == (0, 0) for p in pads):
        return x
    return jnp.pad(x, pads)


def _device_kind():
    try:
        return jax.devices()[0].device_kind.lower()
    except Exception:  # pragma: no cover - CPU/interpret fallbacks
        return ""


def _tensorcores_per_chip():
    """2 TCs on megacore parts (v4/v5p/v7x), 1 on v5e/v6e. Fails safe to 1."""
    kind = _device_kind()
    return 2 if any(t in kind for t in ("v4", "v5p", "v7", "7x")) else 1


def _has_bf16_valu():
    """v6e/v7x VPUs have bf16 ALUs; v5e does not. Fails safe to False (f32 epilogue)."""
    kind = _device_kind()
    return any(t in kind for t in ("v6", "v7", "7x"))


def _mxu_m_granularity():
    return 256 if _has_bf16_valu() else 128


# ----------------------------------------------------------------------------
# kernel body
# ----------------------------------------------------------------------------
def _latent_classifier_kernel(s_ref, w1_ref, b1_ref, w2_ref, b2_ref, o_ref):
    """logits = ReLU(s @ W1 + b1) @ W2 + b2.  Dropout == identity at eval()."""
    w_dtype = w1_ref.dtype            # bf16 MXU operands
    ep_dtype = b1_ref.dtype           # epilogue dtype: f32 (v5e) or bf16 (v6e/v7x)

    # First linear on the MXU (bf16 operands, f32 accumulation).
    h = jnp.dot(s_ref[...].astype(w_dtype), w1_ref[...],
                preferred_element_type=jnp.float32)
    # Bias + ReLU epilogue in the chip-appropriate VPU dtype.
    h = h.astype(ep_dtype) + b1_ref[...]           # (tb, hidden_p) + (1, hidden_p)
    h = jnp.maximum(h, jnp.zeros((), ep_dtype))    # ReLU
    # TODO(synk): Dropout(p=0.2) omitted — identity under eval(); training-mode
    # dropout would use pltpu.prng_seed + pltpu.stateful_bernoulli and a 1/(1-p) scale.

    # Second linear -> logits (bf16 operands, f32 accumulation), f32 bias epilogue.
    logits = jnp.dot(h.astype(w_dtype), w2_ref[...],
                     preferred_element_type=jnp.float32)
    logits = logits + b2_ref[...].astype(jnp.float32)
    o_ref[...] = logits.astype(o_ref.dtype)


# ----------------------------------------------------------------------------
# one-time parameter preparation (hoisted out of the forward)
# ----------------------------------------------------------------------------
def prepare_params(w1, b1, w2, b2, *, lane=128, weight_dtype=jnp.bfloat16,
                   epilogue_dtype=None):
    """Pad hidden/num_classes to lane multiples and cast weights ONCE.

    Doing this per forward call is a wasted HBM pad+convert pass over the weights."""
    if epilogue_dtype is None:
        epilogue_dtype = jnp.bfloat16 if _has_bf16_valu() else jnp.float32
    s_dim, hidden = w1.shape
    num_classes = w2.shape[1]
    hidden_p = _round_up(hidden, lane)
    nc_p = _round_up(num_classes, lane)
    return dict(
        w1=_pad_to(w1, (s_dim, hidden_p)).astype(weight_dtype),
        b1=_pad_to(jnp.reshape(b1, (1, -1)), (1, hidden_p)).astype(epilogue_dtype),
        w2=_pad_to(w2, (hidden_p, nc_p)).astype(weight_dtype),
        b2=_pad_to(jnp.reshape(b2, (1, -1)), (1, nc_p)).astype(jnp.float32),
        s_dim=s_dim, hidden=hidden, hidden_p=hidden_p,
        num_classes=num_classes, nc_p=nc_p,
    )


# ----------------------------------------------------------------------------
# grid / tile selection
# ----------------------------------------------------------------------------
def _choose_grid(batch, *, num_cores, tb_max=512, mxu_m=128):
    """Return (tb, num_steps).

    * Single grid step whenever the batch fits one tile: on 1-TC chips the grid is a
      serial loop and each step costs ~0.35 us + DMA setup, which dominates small B.
    * For large B, keep the step count a multiple of the TC count (balanced megacore
      split on v7x) and round tb to the MXU M granularity, not 8."""
    if batch <= tb_max:
        tb = _round_up(max(batch, 8), 8)
        return tb, 1
    steps = pl.cdiv(batch, tb_max)
    if num_cores > 1:
        steps = _round_up(steps, num_cores)
    tb = _round_up(pl.cdiv(batch, steps), mxu_m)
    steps = pl.cdiv(batch, tb)
    if num_cores > 1:
        steps = _round_up(steps, num_cores)
    return tb, steps


# ----------------------------------------------------------------------------
# forward wrapper
# ----------------------------------------------------------------------------
def latent_classifier_forward(s, params, *, tb=None, out_dtype=jnp.float32,
                              strip_padding=True, single_buffer_weights=False):
    """s: (B, s_dim) f32 or bf16. params: output of prepare_params().

    Returns (B, num_classes) logits in `out_dtype` (or the padded (Bp, nc_p) block if
    strip_padding=False, which avoids an extra XLA pass over the logits)."""
    B, s_dim = s.shape
    assert s_dim == params["s_dim"], "s feature dim mismatch with params"
    hidden_p, nc_p = params["hidden_p"], params["nc_p"]
    w1, b1, w2, b2 = params["w1"], params["b1"], params["w2"], params["b2"]

    num_cores = _tensorcores_per_chip()
    if tb is None:
        tb, steps = _choose_grid(B, num_cores=num_cores, mxu_m=_mxu_m_granularity())
    else:
        steps = pl.cdiv(B, tb)
    Bp = steps * tb
    s_p = _pad_to(s, (Bp, s_dim))      # keep caller dtype (bf16 producer -> no cast)
    grid = (steps,)

    def _resident_spec(shape):
        # Fully-resident operand: constant index_map -> DMA'd once across the grid.
        if single_buffer_weights:
            # Halve the resident-weight VMEM footprint (matters for large hidden /
            # num_classes on v7x's 64 MiB per-TC VMEM); otherwise Pallas allocates
            # two pipeline buffers even with a constant index_map.
            return pl.BlockSpec(shape, lambda i: (0, 0),
                                pipeline_mode=pl.Buffered(1))
        return pl.BlockSpec(shape, lambda i: (0, 0))

    # ---- VMEM budget from the actual footprint (with 2x headroom), not a blanket cap.
    def _isz(a):
        return jnp.dtype(a.dtype).itemsize

    out_isz = jnp.dtype(out_dtype).itemsize
    wbuf = 1 if single_buffer_weights else 2
    weight_bytes = (w1.size * _isz(w1) + b1.size * _isz(b1)
                    + w2.size * _isz(w2) + b2.size * _isz(b2))
    vmem_need = (
        2 * tb * s_dim * _isz(s_p)          # s tiles (double-buffered)
        + 2 * tb * nc_p * out_isz           # output tiles (double-buffered)
        + wbuf * weight_bytes               # resident weights / biases
        + tb * hidden_p * 4                 # f32 intermediate h
        + tb * nc_p * 4                     # f32 logits accumulator
    )
    vmem_limit = int(min(max(2 * vmem_need, 8 * 1024 * 1024), 64 * 1024 * 1024))

    # ---- Cost estimate (helps XLA schedule around this small kernel).
    flops = 2 * Bp * s_dim * hidden_p + 2 * Bp * hidden_p * nc_p
    bytes_accessed = (Bp * s_dim * _isz(s_p) + weight_bytes + Bp * nc_p * out_isz)

    out = pl.pallas_call(
        _latent_classifier_kernel,
        out_shape=jax.ShapeDtypeStruct((Bp, nc_p), out_dtype),
        grid_spec=pltpu.PrefetchScalarGridSpec(
            num_scalar_prefetch=0,
            grid=grid,
            in_specs=[
                pl.BlockSpec((tb, s_dim), lambda i: (i, 0)),    # s tile
                _resident_spec((s_dim, hidden_p)),              # W1 (bf16)
                _resident_spec((1, hidden_p)),                  # b1 (epilogue dtype)
                _resident_spec((hidden_p, nc_p)),               # W2 (bf16)
                _resident_spec((1, nc_p)),                      # b2 (f32)
            ],
            out_specs=pl.BlockSpec((tb, nc_p), lambda i: (i, 0)),   # lane-dense out
        ),
        compiler_params=pltpu.CompilerParams(
            # "parallel" lets the compiler shard the batch axis across TCs on
            # megacore parts; grid length is kept a multiple of the TC count above.
            dimension_semantics=("parallel",),
            vmem_limit_bytes=vmem_limit,
        ),
        cost_estimate=pl.CostEstimate(
            flops=flops, transcendentals=0, bytes_accessed=bytes_accessed),
    )(s_p, w1, b1, w2, b2)

    if strip_padding:
        # NOTE: this slice is an extra pass over the padded logits; consumers that
        # tolerate the padded (Bp, nc_p) layout (e.g. fused argmax/softmax) should
        # call with strip_padding=False.
        return out[:B, :params["num_classes"]]
    return out


# ----------------------------------------------------------------------------
# deterministic init mimicking nn.Linear defaults (U(-1/sqrt(fan_in), +))
# ----------------------------------------------------------------------------
def init_params(key, s_dim, num_classes, hidden_dim_factor=2):
    hidden = s_dim * hidden_dim_factor
    k1, k2, k3, k4 = jax.random.split(key, 4)
    bound1 = 1.0 / math.sqrt(s_dim)
    bound2 = 1.0 / math.sqrt(hidden)
    # Stored as (in, out) so the kernel computes s @ W directly.
    w1 = jax.random.uniform(k1, (s_dim, hidden), jnp.float32, -bound1, bound1)
    b1 = jax.random.uniform(k2, (1, hidden), jnp.float32, -bound1, bound1)
    w2 = jax.random.uniform(k3, (hidden, num_classes), jnp.float32, -bound2, bound2)
    b2 = jax.random.uniform(k4, (1, num_classes), jnp.float32, -bound2, bound2)
    return w1, b1, w2, b2


if __name__ == "__main__":
    B, S_DIM, NUM_CLASSES = 16, 32, 10

    key = jax.random.PRNGKey(0)
    k_s, k_p = jax.random.split(key)
    s = jax.random.normal(k_s, (B, S_DIM), jnp.float32)
    w1, b1, w2, b2 = init_params(k_p, S_DIM, NUM_CLASSES)

    # Pad + cast the weights ONCE (hoisted out of the forward path).
    params = prepare_params(w1, b1, w2, b2)

    logits = latent_classifier_forward(s, params)
    logits = jax.block_until_ready(logits)

    # Reference check in plain JAX f32 (eval-mode dropout == identity).
    # bf16 MXU operands / bf16 epilogue (f32 accumulation) => relaxed tolerance.
    ref = jnp.maximum(s @ w1 + b1, 0.0) @ w2 + b2
    assert logits.shape == (B, NUM_CLASSES)
    assert jnp.allclose(logits, ref, atol=3e-2, rtol=3e-2), (
        f"max abs err {jnp.max(jnp.abs(logits - ref))}")
    print("KERNEL_OK")
</pallas_src>

<mosaic_0001>
module attributes {stable_mosaic.version = 11 : i64} {
  func.func @_latent_classifier_kernel(%arg0: i32, %arg1: memref<16x32xf32, #tpu.memory_space<vmem>>, %arg2: memref<32x128xbf16, #tpu.memory_space<vmem>>, %arg3: memref<1x128xf32, #tpu.memory_space<vmem>>, %arg4: memref<128x128xbf16, #tpu.memory_space<vmem>>, %arg5: memref<1x128xf32, #tpu.memory_space<vmem>>, %arg6: memref<16x128xf32, #tpu.memory_space<vmem>>) attributes {dimension_semantics = [#tpu.dimension_semantics<parallel>], iteration_bounds = array<i64: 1>, scalar_prefetch = 0 : i64, scratch_operands = 0 : i64, tpu.core_type = #tpu.core_type<tc>, window_params = [{transform_indices = @transform_0, window_bounds = array<i64: 16, 32>}, {pipeline_mode = #tpu.pipeline_mode<synchronous>, transform_indices = @transform_1, window_bounds = array<i64: 32, 128>}, {pipeline_mode = #tpu.pipeline_mode<synchronous>, transform_indices = @transform_2, window_bounds = array<i64: 1, 128>}, {pipeline_mode = #tpu.pipeline_mode<synchronous>, transform_indices = @transform_3, window_bounds = array<i64: 128, 128>}, {pipeline_mode = #tpu.pipeline_mode<synchronous>, transform_indices = @transform_4, window_bounds = array<i64: 1, 128>}, {transform_indices = @transform_5, window_bounds = array<i64: 16, 128>}]} {
    %c0 = arith.constant 0 : index
    %c0_0 = arith.constant 0 : index
    %0 = vector.load %arg1[%c0, %c0_0] : memref<16x32xf32, #tpu.memory_space<vmem>>, vector<16x32xf32>
    %1 = arith.truncf %0 : vector<16x32xf32> to vector<16x32xbf16>
    %c0_1 = arith.constant 0 : index
    %c0_2 = arith.constant 0 : index
    %2 = vector.load %arg2[%c0_1, %c0_2] : memref<32x128xbf16, #tpu.memory_space<vmem>>, vector<32x128xbf16>
    %cst = arith.constant dense<0.000000e+00> : vector<16x128xf32>
    %3 = tpu.matmul %1, %2, %cst {dimension_numbers = #tpu.dot_dimension_numbers<[1], [0], [0], [1], [0, 0, 1, 1], [], []>} : vector<16x32xbf16>, vector<32x128xbf16>, vector<16x128xf32> -> vector<16x128xf32>
    %c0_3 = arith.constant 0 : index
    %c0_4 = arith.constant 0 : index
    %4 = vector.load %arg3[%c0_3, %c0_4] : memref<1x128xf32, #tpu.memory_space<vmem>>, vector<1x128xf32>
    %5 = vector.broadcast %4 : vector<1x128xf32> to vector<16x128xf32>
    %6 = arith.addf %3, %5 : vector<16x128xf32>
    %cst_5 = arith.constant 0.000000e+00 : f32
    %7 = vector.broadcast %cst_5 : f32 to vector<16x128xf32>
    %8 = arith.maximumf %6, %7 : vector<16x128xf32>
    %9 = arith.truncf %8 : vector<16x128xf32> to vector<16x128xbf16>
    %c0_6 = arith.constant 0 : index
    %c0_7 = arith.constant 0 : index
    %10 = vector.load %arg4[%c0_6, %c0_7] : memref<128x128xbf16, #tpu.memory_space<vmem>>, vector<128x128xbf16>
    %cst_8 = arith.constant dense<0.000000e+00> : vector<16x128xf32>
    %11 = tpu.matmul %9, %10, %cst_8 {dimension_numbers = #tpu.dot_dimension_numbers<[1], [0], [0], [1], [0, 0, 1, 1], [], []>} : vector<16x128xbf16>, vector<128x128xbf16>, vector<16x128xf32> -> vector<16x128xf32>
    %c0_9 = arith.constant 0 : index
    %c0_10 = arith.constant 0 : index
    %12 = vector.load %arg5[%c0_9, %c0_10] : memref<1x128xf32, #tpu.memory_space<vmem>>, vector<1x128xf32>
    %13 = vector.broadcast %12 : vector<1x128xf32> to vector<16x128xf32>
    %14 = arith.addf %11, %13 : vector<16x128xf32>
    %c0_11 = arith.constant 0 : index
    %c0_12 = arith.constant 0 : index
    %15 = vector.load %arg6[%c0_11, %c0_12] : memref<16x128xf32, #tpu.memory_space<vmem>>, vector<16x128xf32>
    tpu.vector_store %arg6[%c0_11, %c0_12], %14 {strides = array<i32>} : memref<16x128xf32, #tpu.memory_space<vmem>>, vector<16x128xf32>,
    return
  }
  func.func @transform_0(%arg0: i32) -> (i32, i32) {
    %c0_i32 = arith.constant 0 : i32
    %c0_i32_0 = arith.constant 0 : i32
    return %arg0, %c0_i32 : i32, i32
  }
  func.func @transform_1(%arg0: i32) -> (i32, i32) {
    %c0_i32 = arith.constant 0 : i32
    %c0_i32_0 = arith.constant 0 : i32
    %c0_i32_1 = arith.constant 0 : i32
    return %c0_i32, %c0_i32_0 : i32, i32
  }
  func.func @transform_2(%arg0: i32) -> (i32, i32) {
    %c0_i32 = arith.constant 0 : i32
    %c0_i32_0 = arith.constant 0 : i32
    %c0_i32_1 = arith.constant 0 : i32
    return %c0_i32, %c0_i32_0 : i32, i32
  }
  func.func @transform_3(%arg0: i32) -> (i32, i32) {
    %c0_i32 = arith.constant 0 : i32
    %c0_i32_0 = arith.constant 0 : i32
    %c0_i32_1 = arith.constant 0 : i32
    return %c0_i32, %c0_i32_0 : i32, i32
  }
  func.func @transform_4(%arg0: i32) -> (i32, i32) {
    %c0_i32 = arith.constant 0 : i32
    %c0_i32_0 = arith.constant 0 : i32
    %c0_i32_1 = arith.constant 0 : i32
    return %c0_i32, %c0_i32_0 : i32, i32
  }
  func.func @transform_5(%arg0: i32) -> (i32, i32) {
    %c0_i32 = arith.constant 0 : i32
    %c0_i32_0 = arith.constant 0 : i32
    return %arg0, %c0_i32 : i32, i32
  }
}

</mosaic_0001>

<llo_original>
// kernel: tpu_custom_call.1
$region0: #{tpu_custom_call.1}
  #allocation0 [shape = 'u32[]', space=smem, size = 0x4, offset = 0x4, fixed_abs, tag = 'smem constant byte address 0x4 - core index']
  #allocation1 [shape = 'u32[144,128]{1,0:T(1,128)}', space=vmem, size = 0x12000, scoped, tag = 'internal scratch']
  %s0 = inlined_call_operand.hbm [shape: f32[16,32], index: 0, kind: input, shape index: {}]
  %s1 = inlined_call_operand.hbm [shape: bf16[32,128], index: 1, kind: input, shape index: {}]
  %s2 = inlined_call_operand.vmem [shape: f32[1,128], index: 2, kind: input, shape index: {}]
  %s3 = inlined_call_operand.hbm [shape: bf16[128,128], index: 3, kind: input, shape index: {}]
  %s4 = inlined_call_operand.vmem [shape: f32[1,128], index: 4, kind: input, shape index: {}]
  %s5 = inlined_call_operand.hbm [shape: f32[16,128], index: 5, kind: output, shape index: {}]
  %s6 = sld [smem:[#allocation0]]
  $region42: #{tpu_custom_call.1} parent=0
    _
  %s8 = ssub.s32 1, %s6
  %s9 = scalar_select 0, %s8, %s6
  $region1: #{tpu_custom_call.1} parent=0
    #allocation2 [shape = 'u8[8192]{0}', space=vmem, size = 0x2000, scoped, tag = 'input window, operand 0, single buffered']
    #allocation3 [shape = 's32[1]{0}', space=sflag, size = 0x4, scoped, tag = 'scoped memory for tpu_custom_call.1']
    #allocation4 [shape = 's32[1]{0}', space=sflag, size = 0x4, scoped, tag = 'scoped memory for tpu_custom_call.1']
    #allocation5 [shape = 'u8[8192]{0}', space=vmem, size = 0x2000, scoped, tag = 'input window, operand 1, single buffered']
    #allocation6 [shape = 's32[1]{0}', space=sflag, size = 0x4, scoped, tag = 'scoped memory for tpu_custom_call.1']
    #allocation7 [shape = 'u8[32768]{0}', space=vmem, size = 0x8000, scoped, tag = 'input window, operand 3, single buffered']
    #allocation8 [shape = 'u8[8192]{0}', space=vmem, size = 0x2000, scoped, tag = 'output window, operand 0, single buffered']
    %10 = vsyncpa [#allocation3], 0
    %11 = vsyncpa [#allocation6], 0
    %12 = vsyncpa [#allocation4], 0
    // Predicated region
    $region2: #{tpu_custom_call.1} parent=1 // pred_check
      _
    $region3: #{tpu_custom_call.1} parent=1 // pred_check_branch
      %14 = sbr.rel (0) target = $region5
    $region4: #{tpu_custom_call.1} parent=1 // pred_region
      %s16 = ssub.s32 256, 256
      %17 = vsyncadd [#allocation3], %s16
      %s18 = sshll.u32 [#allocation2], 4
      %s19 = int_to_ptr.vmem [resolvable:$true] %s18
      %24 = dma.hbm_to_vmem [thread:$0]  %s0, 256, %s19, [#allocation3], 128, 128, 8
    $region5: #{tpu_custom_call.1} parent=1 // pred_fallthru
      _
    // Predicated region
    $region6: #{tpu_custom_call.1} parent=1 // pred_check
      _
    $region7: #{tpu_custom_call.1} parent=1 // pred_check_branch
      %26 = sbr.rel (0) target = $region9
    $region8: #{tpu_custom_call.1} parent=1 // pred_region
      %s28 = ssub.s32 256, 256
      %29 = vsyncadd [#allocation6], %s28
      %s30 = sshll.u32 [#allocation5], 4
      %s31 = int_to_ptr.vmem [resolvable:$true] %s30
      %36 = dma.hbm_to_vmem [thread:$0]  %s1, 256, %s31, [#allocation6], 64, 64, 4
    $region9: #{tpu_custom_call.1} parent=1 // pred_fallthru
      _
    // Predicated region
    $region10: #{tpu_custom_call.1} parent=1 // pred_check
      _
    $region11: #{tpu_custom_call.1} parent=1 // pred_check_branch
      %38 = sbr.rel (0) target = $region13
    $region12: #{tpu_custom_call.1} parent=1 // pred_region
      _
    $region13: #{tpu_custom_call.1} parent=1 // pred_fallthru
      _
    // Predicated region
    $region14: #{tpu_custom_call.1} parent=1 // pred_check
      _
    $region15: #{tpu_custom_call.1} parent=1 // pred_check_branch
      %40 = sbr.rel (0) target = $region17
    $region16: #{tpu_custom_call.1} parent=1 // pred_region
      %s42 = ssub.s32 1024, 1024
      %43 = vsyncadd [#allocation6], %s42
      %s44 = sshll.u32 [#allocation7], 4
      %s45 = int_to_ptr.vmem [resolvable:$true] %s44
      %50 = dma.hbm_to_vmem [thread:$0]  %s3, 1024, %s45, [#allocation6], 64, 64, 4
    $region17: #{tpu_custom_call.1} parent=1 // pred_fallthru
      _
    // Predicated region
    $region18: #{tpu_custom_call.1} parent=1 // pred_check
      _
    $region19: #{tpu_custom_call.1} parent=1 // pred_check_branch
      %52 = sbr.rel (0) target = $region21
    $region20: #{tpu_custom_call.1} parent=1 // pred_region
      _
    $region21: #{tpu_custom_call.1} parent=1 // pred_fallthru
      _
    // Predicated region
    $region22: #{tpu_custom_call.1} parent=1 // pred_check
      _
    $region23: #{tpu_custom_call.1} parent=1 // pred_check_branch
      %54 = sbr.rel (0) target = $region25
    $region24: #{tpu_custom_call.1} parent=1 // pred_region
      %55 = dma.done [#allocation3], 256
    $region25: #{tpu_custom_call.1} parent=1 // pred_fallthru
      _
    // Predicated region
    $region26: #{tpu_custom_call.1} parent=1 // pred_check
      _
    $region27: #{tpu_custom_call.1} parent=1 // pred_check_branch
      %57 = sbr.rel (0) target = $region29
    $region28: #{tpu_custom_call.1} parent=1 // pred_region
      %58 = dma.done [#allocation6], 256
    $region29: #{tpu_custom_call.1} parent=1 // pred_fallthru
      _
    // Predicated region
    $region30: #{tpu_custom_call.1} parent=1 // pred_check
      _
    $region31: #{tpu_custom_call.1} parent=1 // pred_check_branch
      %60 = sbr.rel (0) target = $region33
    $region32: #{tpu_custom_call.1} parent=1 // pred_region
      %61 = dma.done [#allocation6], 1024
    $region33: #{tpu_custom_call.1} parent=1 // pred_fallthru
      _
    %v63 = vld [vmem:[#allocation2] sm:$0xff]
    %v64 = vld [vmem:[#allocation2 + $0x8] sm:$0xff]
    %v65 = vpack.c.bf16 %v64, %v63
    %v66 = vld [vmem:[#allocation5] sm:$0xf]
    %v67 = vld [vmem:[#allocation5 + $0x4] sm:$0xf]
    %v68 = vld [vmem:[#allocation5 + $0x8] sm:$0xf]
    %v69 = vld [vmem:[#allocation5 + $0xc] sm:$0xf]
    %v70 = vld [vmem:[%s2] sm:$0x1]
    %v72 = vlaneseq
    %v73 = vshrl.u32 %v72, 7
    %v74 = vsub.s32 0, %v73
    %v75 = vrot.slane %v70, %v74
    %v81 = vunpack.c.l.b16 %v66
    %v82 = vunpack.c.l.b16 %v67
    %v83 = vunpack.c.l.b16 %v68
    %v84 = vunpack.c.l.b16 %v69
    %v85 = vpack.c.b16 %v82, %v81
    %v86 = vpack.c.b16 %v84, %v83
    %vm89 = vcmask 261120
    %v91 = vsel %vm89, %v65, 0
    %93 = vmatprep.subr.bf16.mxu0 0
    %94 = vmatpush1.bf16.msra.mxu0 0
    %95 = vmatprep.subr.bf16.mxu0 0
    %96 = vmatpush1.bf16.msra.mxu0 0
    %97 = vmatprep.subr.bf16.mxu0 0
    %98 = vmatpush1.bf16.msra.mxu0 0
    %99 = vmatprep.subr.bf16.mxu0 0
    %100 = vmatpush1.bf16.msra.mxu0 0
    %101 = vmatprep.subr.bf16.mxu0 0
    %102 = vmatpush1.bf16.msra.mxu0 0
    %103 = vmatprep.subr.bf16.mxu0 0
    %104 = vmatpush1.bf16.msra.mxu0 0
    %105 = vmatprep.subr.bf16.mxu0 0
    %106 = vmatpush1.bf16.msra.mxu0 %v86
    %107 = vmatprep.subr.bf16.mxu0 0
    %108 = vmatpush1.bf16.msra.mxu0 %v85
    %109 = vmatprep.subr.bf16.mxu0 0
    %110 = vmatpush2.bf16.msra.mxu0 0
    %111 = vmatprep.subr.bf16.mxu0 0
    %112 = vmatpush2.bf16.msra.mxu0 0
    %113 = vmatprep.subr.bf16.mxu0 0
    %114 = vmatpush2.bf16.msra.mxu0 0
    %115 = vmatprep.subr.bf16.mxu0 0
    %116 = vmatpush2.bf16.msra.mxu0 0
    %117 = vmatprep.subr.bf16.mxu0 0
    %118 = vmatpush2.bf16.msra.mxu0 0
    %119 = vmatprep.subr.bf16.mxu0 0
    %120 = vmatpush2.bf16.msra.mxu0 0
    %121 = vmatprep.subr.bf16.mxu0 0
    %122 = vmatpush2.bf16.msra.mxu0 0
    %123 = vmatprep.subr.bf16.mxu0 0
    %124 = vmatpush2.bf16.msra.mxu0 0
    %125 = vmatprep.mubr.bf16.mxu0 0
    %126 = vmatmul.mubr.bf16.gmra.mxu0 %v91
    %v127 = vpop.f32.mrf.mxu0
    %v128 = vadd.f32 %v75, %v127
    %v129 = vpop.f32.mrf.mxu0
    %v130 = vpop.f32.mrf.mxu0
    %v131 = vadd.f32 %v75, %v130
    %v132 = vpop.f32.mrf.mxu0
    %133 = vdwg.mxu0
    %v134 = vmax.f32 %v128, 0.0
    %v135 = vmax.f32 %v131, 0.0
    %v136 = vpack.c.bf16 %v135, %v134
    %v137 = vld [vmem:[#allocation7] sm:$0xf]
    %v138 = vld [vmem:[#allocation7 + $0x4] sm:$0xf]
    %v139 = vld [vmem:[#allocation7 + $0x8] sm:$0xf]
    %v140 = vld [vmem:[#allocation7 + $0xc] sm:$0xf]
    %v141 = vld [vmem:[#allocation7 + $0x10] sm:$0xf]
    %v142 = vld [vmem:[#allocation7 + $0x14] sm:$0xf]
    %v143 = vld [vmem:[#allocation7 + $0x18] sm:$0xf]
    %v144 = vld [vmem:[#allocation7 + $0x1c] sm:$0xf]
    %v145 = vld [vmem:[#allocation7 + $0x20] sm:$0xf]
    %v146 = vld [vmem:[#allocation7 + $0x24] sm:$0xf]
    %v147 = vld [vmem:[#allocation7 + $0x28] sm:$0xf]
    %v148 = vld [vmem:[#allocation7 + $0x2c] sm:$0xf]
    %v149 = vld [vmem:[#allocation7 + $0x30] sm:$0xf]
    %v150 = vld [vmem:[#allocation7 + $0x34] sm:$0xf]
    %v151 = vld [vmem:[#allocation7 + $0x38] sm:$0xf]
    %v152 = vld [vmem:[#allocation7 + $0x3c] sm:$0xf]
    %v153 = vld [vmem:[%s4] sm:$0x1]
    %v155 = vlaneseq
    %v156 = vshrl.u32 %v155, 7
    %v157 = vsub.s32 0, %v156
    %v158 = vrot.slane %v153, %v157
    %v176 = vunpack.c.l.b16 %v137
    %v177 = vunpack.c.l.b16 %v138
    %v178 = vunpack.c.l.b16 %v139
    %v179 = vunpack.c.l.b16 %v140
    %v180 = vunpack.c.l.b16 %v141
    %v181 = vunpack.c.l.b16 %v142
    %v182 = vunpack.c.l.b16 %v143
    %v183 = vunpack.c.l.b16 %v144
    %v184 = vunpack.c.l.b16 %v145
    %v185 = vunpack.c.l.b16 %v146
    %v186 = vunpack.c.l.b16 %v147
    %v187 = vunpack.c.l.b16 %v148
    %v188 = vunpack.c.l.b16 %v149
    %v189 = vunpack.c.l.b16 %v150
    %v190 = vunpack.c.l.b16 %v151
    %v191 = vunpack.c.l.b16 %v152
    %v192 = vpack.c.b16 %v177, %v176
    %v193 = vpack.c.b16 %v179, %v178
    %v194 = vpack.c.b16 %v181, %v180
    %v195 = vpack.c.b16 %v183, %v182
    %v196 = vpack.c.b16 %v185, %v184
    %v197 = vpack.c.b16 %v187, %v186
    %v198 = vpack.c.b16 %v189, %v188
    %v199 = vpack.c.b16 %v191, %v190
    %208 = vmatprep.subr.bf16.mxu0 0
    %209 = vmatpush1.bf16.msra.mxu0 %v199
    %210 = vmatprep.subr.bf16.mxu0 0
    %211 = vmatpush1.bf16.msra.mxu0 %v198
    %212 = vmatprep.subr.bf16.mxu0 0
    %213 = vmatpush1.bf16.msra.mxu0 %v197
    %214 = vmatprep.subr.bf16.mxu0 0
    %215 = vmatpush1.bf16.msra.mxu0 %v196
    %216 = vmatprep.subr.bf16.mxu0 0
    %217 = vmatpush1.bf16.msra.mxu0 %v195
    %218 = vmatprep.subr.bf16.mxu0 0
    %219 = vmatpush1.bf16.msra.mxu0 %v194
    %220 = vmatprep.subr.bf16.mxu0 0
    %221 = vmatpush1.bf16.msra.mxu0 %v193
    %222 = vmatprep.subr.bf16.mxu0 0
    %223 = vmatpush1.bf16.msra.mxu0 %v192
    %224 = vmatprep.subr.bf16.mxu0 0
    %225 = vmatpush2.bf16.msra.mxu0 0
    %226 = vmatprep.subr.bf16.mxu0 0
    %227 = vmatpush2.bf16.msra.mxu0 0
    %228 = vmatprep.subr.bf16.mxu0 0
    %229 = vmatpush2.bf16.msra.mxu0 0
    %230 = vmatprep.subr.bf16.mxu0 0
    %231 = vmatpush2.bf16.msra.mxu0 0
    %232 = vmatprep.subr.bf16.mxu0 0
    %233 = vmatpush2.bf16.msra.mxu0 0
    %234 = vmatprep.subr.bf16.mxu0 0
    %235 = vmatpush2.bf16.msra.mxu0 0
    %236 = vmatprep.subr.bf16.mxu0 0
    %237 = vmatpush2.bf16.msra.mxu0 0
    %238 = vmatprep.subr.bf16.mxu0 0
    %239 = vmatpush2.bf16.msra.mxu0 0
    %240 = vmatprep.mubr.bf16.mxu0 0
    %241 = vmatmul.mubr.bf16.gmra.mxu0 %v136
    %v242 = vpop.f32.mrf.mxu0
    %v243 = vadd.f32 %v158, %v242
    %v244 = vpop.f32.mrf.mxu0
    %v245 = vpop.f32.mrf.mxu0
    %v246 = vadd.f32 %v158, %v245
    %v247 = vpop.f32.mrf.mxu0
    %248 = vdwg.mxu0
    %249 = vst [vmem:[#allocation8] sm:$0xff] %v243
    %250 = vst [vmem:[#allocation8 + $0x8] sm:$0xff] %v246
    // Predicated region
    $region34: #{tpu_custom_call.1} parent=1 // pred_check
      _
    $region35: #{tpu_custom_call.1} parent=1 // pred_check_branch
      %252 = sbr.rel (0) target = $region37
    $region36: #{tpu_custom_call.1} parent=1 // pred_region
      %s254 = ssub.s32 256, 256
      %255 = vsyncadd [#allocation4], %s254
      %s256 = sshll.u32 [#allocation8], 4
      %s257 = int_to_ptr.vmem [resolvable:$true] %s256
      %262 = dma.vmem_to_hbm [thread:$0]  %s257, 256, %s5, [#allocation4], 128, 128, 8
    $region37: #{tpu_custom_call.1} parent=1 // pred_fallthru
      _
    // Predicated region
    $region38: #{tpu_custom_call.1} parent=1 // pred_check
      _
    $region39: #{tpu_custom_call.1} parent=1 // pred_check_branch
      %264 = sbr.rel (0) target = $region41
    $region40: #{tpu_custom_call.1} parent=1 // pred_region
      %265 = dma.done [#allocation4], 256
    $region41: #{tpu_custom_call.1} parent=1 // pred_fallthru
      _
    %266 = vsyncpa [#allocation3], 1
    %267 = vsyncpa [#allocation6], 1
    %268 = vsyncpa [#allocation4], 1

</llo_original>
